<compile_context>
chip_gen: v6e
topology: v6e:2x2x1
jax: 0.10.0
libtpu: 0.0.40
codegen_flags: <defaults>
</compile_context>

<pallas_src>
import functools

import jax
import jax.numpy as jnp
from jax.experimental import pallas as pl
from jax.experimental.pallas import tpu as pltpu

IP_EMB = 784
EMB1 = 256
EMB2 = 128
OUT_EMB = 1
OUT_PAD = 128  # lane-dense padded output width (>= OUT_EMB, multiple of 128)


def _round_up(x, m):
    return ((x + m - 1) // m) * m


def _leaky_relu(x, slope=0.2):
    return jnp.where(x >= 0, x, slope * x)


def discriminator_kernel(x_ref,
                         w1_ref, b1_ref,
                         w2_ref, b2_ref,
                         w3_ref, b3_ref,
                         o_ref,
                         *, compute_dtype):
    # All three matmuls fused; weights stay resident in VMEM across the grid.
    def mm(a, w_ref):
        return jnp.dot(a.astype(compute_dtype),
                       w_ref[...].astype(compute_dtype),
                       preferred_element_type=jnp.float32)

    x = x_ref[...]

    h = mm(x, w1_ref) + b1_ref[...]
    h = _leaky_relu(h)
    # Dropout(0.3): identity in eval mode.

    h = mm(h, w2_ref) + b2_ref[...]
    h = _leaky_relu(h)
    # Dropout(0.3): identity in eval mode.

    h = mm(h, w3_ref) + b3_ref[...]
    o_ref[...] = jax.nn.sigmoid(h)


@functools.partial(jax.jit, static_argnames=("block_b", "use_bf16"))
def discriminator_forward(x, params, block_b=256, use_bf16=True):
    """x: (B, 784) f32.  params: dict of (in,out) weights and (1,out) biases.

    Returns (B, 1) f32 probabilities.
    """
    B, D = x.shape
    assert D == IP_EMB

    # Effective batch tile: multiple of 8, no larger than needed for small B.
    bb = max(8, (min(block_b, _round_up(B, 8)) // 8) * 8)
    padded_B = _round_up(B, bb)
    if padded_B != B:
        x = jnp.pad(x, ((0, padded_B - B), (0, 0)))

    w1, b1 = params["w1"], params["b1"]
    w2, b2 = params["w2"], params["b2"]
    w3, b3 = params["w3"], params["b3"]

    # Lane-dense output: pad the final layer from 1 to OUT_PAD columns with
    # zeros; extra columns are sliced away after the kernel.
    w3p = jnp.pad(w3, ((0, 0), (0, OUT_PAD - OUT_EMB)))
    b3p = jnp.pad(b3, ((0, 0), (0, OUT_PAD - OUT_EMB)))

    compute_dtype = jnp.bfloat16 if use_bf16 else jnp.float32

    def full_spec(shape):
        # Whole array as one block; same block for every grid step.
        return pl.BlockSpec(shape, lambda i: (0, 0))

    flops = 2 * padded_B * (IP_EMB * EMB1 + EMB1 * EMB2 + EMB2 * OUT_PAD)
    transcendentals = padded_B * OUT_PAD  # sigmoid
    bytes_accessed = 4 * (padded_B * IP_EMB
                          + IP_EMB * EMB1 + EMB1
                          + EMB1 * EMB2 + EMB2
                          + EMB2 * OUT_PAD + OUT_PAD
                          + padded_B * OUT_PAD)

    out_padded = pl.pallas_call(
        functools.partial(discriminator_kernel, compute_dtype=compute_dtype),
        out_shape=jax.ShapeDtypeStruct((padded_B, OUT_PAD), jnp.float32),
        grid_spec=pltpu.PrefetchScalarGridSpec(
            num_scalar_prefetch=0,
            grid=(padded_B // bb,),
            in_specs=[
                pl.BlockSpec((bb, IP_EMB), lambda i: (i, 0)),   # x tile
                full_spec((IP_EMB, EMB1)), full_spec((1, EMB1)),
                full_spec((EMB1, EMB2)),   full_spec((1, EMB2)),
                full_spec((EMB2, OUT_PAD)), full_spec((1, OUT_PAD)),
            ],
            out_specs=pl.BlockSpec((bb, OUT_PAD), lambda i: (i, 0)),
        ),
        compiler_params=pltpu.CompilerParams(
            dimension_semantics=("parallel",),
        ),
        cost_estimate=pl.CostEstimate(
            flops=flops,
            transcendentals=transcendentals,
            bytes_accessed=bytes_accessed,
        ),
    )(x, w1, b1, w2, b2, w3p, b3p)

    return out_padded[:B, :OUT_EMB]


def init_params(key):
    """Deterministic init mimicking PyTorch nn.Linear default:
    U(-1/sqrt(fan_in), 1/sqrt(fan_in)). Weights stored as (in, out)."""
    dims = [(IP_EMB, EMB1), (EMB1, EMB2), (EMB2, OUT_EMB)]
    params = {}
    keys = jax.random.split(key, 2 * len(dims))
    for idx, (fan_in, fan_out) in enumerate(dims):
        bound = 1.0 / (fan_in ** 0.5)
        w = jax.random.uniform(keys[2 * idx], (fan_in, fan_out),
                               minval=-bound, maxval=bound, dtype=jnp.float32)
        b = jax.random.uniform(keys[2 * idx + 1], (1, fan_out),
                               minval=-bound, maxval=bound, dtype=jnp.float32)
        params[f"w{idx + 1}"] = w
        params[f"b{idx + 1}"] = b
    return params


def reference_forward(x, params, use_bf16=True):
    cd = jnp.bfloat16 if use_bf16 else jnp.float32

    def mm(a, w):
        return jnp.dot(a.astype(cd), w.astype(cd),
                       preferred_element_type=jnp.float32)

    h = _leaky_relu(mm(x, params["w1"]) + params["b1"])
    h = _leaky_relu(mm(h, params["w2"]) + params["b2"])
    return jax.nn.sigmoid(mm(h, params["w3"]) + params["b3"])


if __name__ == "__main__":
    key = jax.random.PRNGKey(0)
    pkey, xkey = jax.random.split(key)

    params = init_params(pkey)
    batch = 8
    x = jax.random.normal(xkey, (batch, IP_EMB), dtype=jnp.float32)

    out = discriminator_forward(x, params, block_b=256, use_bf16=True)
    out = jax.block_until_ready(out)

    ref = jax.block_until_ready(reference_forward(x, params, use_bf16=True))
    assert out.shape == (batch, OUT_EMB)
    assert jnp.allclose(out, ref, atol=2e-3, rtol=2e-3), (
        float(jnp.max(jnp.abs(out - ref))))

    print("KERNEL_OK")
</pallas_src>

<mosaic_0001>
module attributes {stable_mosaic.version = 11 : i64} {
  func.func @discriminator_kernel(%arg0: i32, %arg1: memref<8x784xf32, #tpu.memory_space<vmem>>, %arg2: memref<784x256xf32, #tpu.memory_space<vmem>>, %arg3: memref<1x256xf32, #tpu.memory_space<vmem>>, %arg4: memref<256x128xf32, #tpu.memory_space<vmem>>, %arg5: memref<1x128xf32, #tpu.memory_space<vmem>>, %arg6: memref<128x128xf32, #tpu.memory_space<vmem>>, %arg7: memref<1x128xf32, #tpu.memory_space<vmem>>, %arg8: memref<8x128xf32, #tpu.memory_space<vmem>>) attributes {dimension_semantics = [#tpu.dimension_semantics<parallel>], iteration_bounds = array<i64: 1>, scalar_prefetch = 0 : i64, scratch_operands = 0 : i64, tpu.core_type = #tpu.core_type<tc>, window_params = [{transform_indices = @transform_0, window_bounds = array<i64: 8, 784>}, {pipeline_mode = #tpu.pipeline_mode<synchronous>, transform_indices = @transform_1, window_bounds = array<i64: 784, 256>}, {pipeline_mode = #tpu.pipeline_mode<synchronous>, transform_indices = @transform_2, window_bounds = array<i64: 1, 256>}, {pipeline_mode = #tpu.pipeline_mode<synchronous>, transform_indices = @transform_3, window_bounds = array<i64: 256, 128>}, {pipeline_mode = #tpu.pipeline_mode<synchronous>, transform_indices = @transform_4, window_bounds = array<i64: 1, 128>}, {pipeline_mode = #tpu.pipeline_mode<synchronous>, transform_indices = @transform_5, window_bounds = array<i64: 128, 128>}, {pipeline_mode = #tpu.pipeline_mode<synchronous>, transform_indices = @transform_6, window_bounds = array<i64: 1, 128>}, {transform_indices = @transform_7, window_bounds = array<i64: 8, 128>}]} {
    %c0 = arith.constant 0 : index
    %c0_0 = arith.constant 0 : index
    %0 = vector.load %arg1[%c0, %c0_0] : memref<8x784xf32, #tpu.memory_space<vmem>>, vector<8x784xf32>
    %1 = arith.truncf %0 : vector<8x784xf32> to vector<8x784xbf16>
    %c0_1 = arith.constant 0 : index
    %c0_2 = arith.constant 0 : index
    %2 = vector.load %arg2[%c0_1, %c0_2] : memref<784x256xf32, #tpu.memory_space<vmem>>, vector<784x256xf32>
    %3 = arith.truncf %2 : vector<784x256xf32> to vector<784x256xbf16>
    %cst = arith.constant dense<0.000000e+00> : vector<8x256xf32>
    %4 = tpu.matmul %1, %3, %cst {dimension_numbers = #tpu.dot_dimension_numbers<[1], [0], [0], [1], [0, 0, 1, 1], [], []>} : vector<8x784xbf16>, vector<784x256xbf16>, vector<8x256xf32> -> vector<8x256xf32>
    %c0_3 = arith.constant 0 : index
    %c0_4 = arith.constant 0 : index
    %5 = vector.load %arg3[%c0_3, %c0_4] : memref<1x256xf32, #tpu.memory_space<vmem>>, vector<1x256xf32>
    %6 = vector.broadcast %5 : vector<1x256xf32> to vector<8x256xf32>
    %7 = arith.addf %4, %6 : vector<8x256xf32>
    %cst_5 = arith.constant 0.000000e+00 : f32
    %8 = vector.broadcast %cst_5 : f32 to vector<8x256xf32>
    %9 = arith.cmpf oge, %7, %8 : vector<8x256xf32>
    %cst_6 = arith.constant 2.000000e-01 : f32
    %10 = vector.broadcast %cst_6 : f32 to vector<8x256xf32>
    %11 = arith.mulf %10, %7 : vector<8x256xf32>
    %12 = arith.select %9, %7, %11 : vector<8x256xi1>, vector<8x256xf32>
    %13 = arith.truncf %12 : vector<8x256xf32> to vector<8x256xbf16>
    %c0_7 = arith.constant 0 : index
    %c0_8 = arith.constant 0 : index
    %14 = vector.load %arg4[%c0_7, %c0_8] : memref<256x128xf32, #tpu.memory_space<vmem>>, vector<256x128xf32>
    %15 = arith.truncf %14 : vector<256x128xf32> to vector<256x128xbf16>
    %cst_9 = arith.constant dense<0.000000e+00> : vector<8x128xf32>
    %16 = tpu.matmul %13, %15, %cst_9 {dimension_numbers = #tpu.dot_dimension_numbers<[1], [0], [0], [1], [0, 0, 1, 1], [], []>} : vector<8x256xbf16>, vector<256x128xbf16>, vector<8x128xf32> -> vector<8x128xf32>
    %c0_10 = arith.constant 0 : index
    %c0_11 = arith.constant 0 : index
    %17 = vector.load %arg5[%c0_10, %c0_11] : memref<1x128xf32, #tpu.memory_space<vmem>>, vector<1x128xf32>
    %18 = vector.broadcast %17 : vector<1x128xf32> to vector<8x128xf32>
    %19 = arith.addf %16, %18 : vector<8x128xf32>
    %cst_12 = arith.constant 0.000000e+00 : f32
    %20 = vector.broadcast %cst_12 : f32 to vector<8x128xf32>
    %21 = arith.cmpf oge, %19, %20 : vector<8x128xf32>
    %cst_13 = arith.constant 2.000000e-01 : f32
    %22 = vector.broadcast %cst_13 : f32 to vector<8x128xf32>
    %23 = arith.mulf %22, %19 : vector<8x128xf32>
    %24 = arith.select %21, %19, %23 : vector<8x128xi1>, vector<8x128xf32>
    %25 = arith.truncf %24 : vector<8x128xf32> to vector<8x128xbf16>
    %c0_14 = arith.constant 0 : index
    %c0_15 = arith.constant 0 : index
    %26 = vector.load %arg6[%c0_14, %c0_15] : memref<128x128xf32, #tpu.memory_space<vmem>>, vector<128x128xf32>
    %27 = arith.truncf %26 : vector<128x128xf32> to vector<128x128xbf16>
    %cst_16 = arith.constant dense<0.000000e+00> : vector<8x128xf32>
    %28 = tpu.matmul %25, %27, %cst_16 {dimension_numbers = #tpu.dot_dimension_numbers<[1], [0], [0], [1], [0, 0, 1, 1], [], []>} : vector<8x128xbf16>, vector<128x128xbf16>, vector<8x128xf32> -> vector<8x128xf32>
    %c0_17 = arith.constant 0 : index
    %c0_18 = arith.constant 0 : index
    %29 = vector.load %arg7[%c0_17, %c0_18] : memref<1x128xf32, #tpu.memory_space<vmem>>, vector<1x128xf32>
    %30 = vector.broadcast %29 : vector<1x128xf32> to vector<8x128xf32>
    %31 = arith.addf %28, %30 : vector<8x128xf32>
    %32 = arith.negf %31 : vector<8x128xf32>
    %33 = math.exp %32 : vector<8x128xf32>
    %cst_19 = arith.constant 1.000000e+00 : f32
    %34 = vector.broadcast %cst_19 : f32 to vector<8x128xf32>
    %35 = arith.addf %34, %33 : vector<8x128xf32>
    %36 = arith.divf %34, %35 : vector<8x128xf32>
    %c0_20 = arith.constant 0 : index
    %c0_21 = arith.constant 0 : index
    %37 = vector.load %arg8[%c0_20, %c0_21] : memref<8x128xf32, #tpu.memory_space<vmem>>, vector<8x128xf32>
    tpu.vector_store %arg8[%c0_20, %c0_21], %36 {strides = array<i32>} : memref<8x128xf32, #tpu.memory_space<vmem>>, vector<8x128xf32>,
    return
  }
  func.func @transform_0(%arg0: i32) -> (i32, i32) {
    %c0_i32 = arith.constant 0 : i32
    %c0_i32_0 = arith.constant 0 : i32
    return %arg0, %c0_i32 : i32, i32
  }
  func.func @transform_1(%arg0: i32) -> (i32, i32) {
    %c0_i32 = arith.constant 0 : i32
    %c0_i32_0 = arith.constant 0 : i32
    %c0_i32_1 = arith.constant 0 : i32
    return %c0_i32, %c0_i32_0 : i32, i32
  }
  func.func @transform_2(%arg0: i32) -> (i32, i32) {
    %c0_i32 = arith.constant 0 : i32
    %c0_i32_0 = arith.constant 0 : i32
    %c0_i32_1 = arith.constant 0 : i32
    return %c0_i32, %c0_i32_0 : i32, i32
  }
  func.func @transform_3(%arg0: i32) -> (i32, i32) {
    %c0_i32 = arith.constant 0 : i32
    %c0_i32_0 = arith.constant 0 : i32
    %c0_i32_1 = arith.constant 0 : i32
    return %c0_i32, %c0_i32_0 : i32, i32
  }
  func.func @transform_4(%arg0: i32) -> (i32, i32) {
    %c0_i32 = arith.constant 0 : i32
    %c0_i32_0 = arith.constant 0 : i32
    %c0_i32_1 = arith.constant 0 : i32
    return %c0_i32, %c0_i32_0 : i32, i32
  }
  func.func @transform_5(%arg0: i32) -> (i32, i32) {
    %c0_i32 = arith.constant 0 : i32
    %c0_i32_0 = arith.constant 0 : i32
    %c0_i32_1 = arith.constant 0 : i32
    return %c0_i32, %c0_i32_0 : i32, i32
  }
  func.func @transform_6(%arg0: i32) -> (i32, i32) {
    %c0_i32 = arith.constant 0 : i32
    %c0_i32_0 = arith.constant 0 : i32
    %c0_i32_1 = arith.constant 0 : i32
    return %c0_i32, %c0_i32_0 : i32, i32
  }
  func.func @transform_7(%arg0: i32) -> (i32, i32) {
    %c0_i32 = arith.constant 0 : i32
    %c0_i32_0 = arith.constant 0 : i32
    return %arg0, %c0_i32 : i32, i32
  }
}

</mosaic_0001>

<llo_original>
// kernel: discriminator_forward.1
$region0: #{discriminator_forward.1}
  #allocation0 [shape = 'u32[]', space=smem, size = 0x4, offset = 0x4, fixed_abs, tag = 'smem constant byte address 0x4 - core index']
  #allocation1 [shape = 'u32[144,128]{1,0:T(1,128)}', space=vmem, size = 0x12000, scoped, tag = 'internal scratch']
  %s0 = inlined_call_operand.vmem [shape: f32[8,784], index: 0, kind: input, shape index: {}]
  %s1 = inlined_call_operand.hbm [shape: f32[784,256], index: 1, kind: input, shape index: {}]
  %s2 = inlined_call_operand.vmem [shape: f32[1,256], index: 2, kind: input, shape index: {}]
  %s3 = inlined_call_operand.vmem [shape: f32[256,128], index: 3, kind: input, shape index: {}]
  %s4 = inlined_call_operand.vmem [shape: f32[1,128], index: 4, kind: input, shape index: {}]
  %s5 = inlined_call_operand.vmem [shape: f32[128,128], index: 5, kind: input, shape index: {}]
  %s6 = inlined_call_operand.vmem [shape: f32[1,128], index: 6, kind: input, shape index: {}]
  %s7 = inlined_call_operand.vmem [shape: f32[8,128], index: 7, kind: output, shape index: {}]
  %s8 = sld [smem:[#allocation0]]
  $region42: #{discriminator_forward.1} parent=0
    _
  %s10 = ssub.s32 1, %s8
  %s11 = scalar_select 0, %s10, %s8
  $region1: #{discriminator_forward.1} parent=0
    #allocation2 [shape = 'u8[802816]{0}', space=vmem, size = 0xc4000, scoped, tag = 'input window, operand 1, single buffered']
    #allocation3 [shape = 's32[1]{0}', space=sflag, size = 0x4, scoped, tag = 'scoped memory for discriminator_forward.1']
    %12 = vsyncpa [#allocation3], 0
    // Predicated region
    $region2: #{discriminator_forward.1} parent=1 // pred_check
      _
    $region3: #{discriminator_forward.1} parent=1 // pred_check_branch
      %14 = sbr.rel (0) target = $region5
    $region4: #{discriminator_forward.1} parent=1 // pred_region
      _
    $region5: #{discriminator_forward.1} parent=1 // pred_fallthru
      _
    // Predicated region
    $region6: #{discriminator_forward.1} parent=1 // pred_check
      _
    $region7: #{discriminator_forward.1} parent=1 // pred_check_branch
      %16 = sbr.rel (0) target = $region9
    $region8: #{discriminator_forward.1} parent=1 // pred_region
      %s18 = ssub.s32 25088, 25088
      %19 = vsyncadd [#allocation3], %s18
      %s20 = sshll.u32 [#allocation2], 4
      %s21 = int_to_ptr.vmem [resolvable:$true] %s20
      %26 = dma.hbm_to_vmem [thread:$0]  %s1, 25088, %s21, [#allocation3], 256, 256, 16
    $region9: #{discriminator_forward.1} parent=1 // pred_fallthru
      _
    // Predicated region
    $region10: #{discriminator_forward.1} parent=1 // pred_check
      _
    $region11: #{discriminator_forward.1} parent=1 // pred_check_branch
      %28 = sbr.rel (0) target = $region13
    $region12: #{discriminator_forward.1} parent=1 // pred_region
      _
    $region13: #{discriminator_forward.1} parent=1 // pred_fallthru
      _
    // Predicated region
    $region14: #{discriminator_forward.1} parent=1 // pred_check
      _
    $region15: #{discriminator_forward.1} parent=1 // pred_check_branch
      %30 = sbr.rel (0) target = $region17
    $region16: #{discriminator_forward.1} parent=1 // pred_region
      _
    $region17: #{discriminator_forward.1} parent=1 // pred_fallthru
      _
    // Predicated region
    $region18: #{discriminator_forward.1} parent=1 // pred_check
      _
    $region19: #{discriminator_forward.1} parent=1 // pred_check_branch
      %32 = sbr.rel (0) target = $region21
    $region20: #{discriminator_forward.1} parent=1 // pred_region
      _
    $region21: #{discriminator_forward.1} parent=1 // pred_fallthru
      _
    // Predicated region
    $region22: #{discriminator_forward.1} parent=1 // pred_check
      _
    $region23: #{discriminator_forward.1} parent=1 // pred_check_branch
      %34 = sbr.rel (0) target = $region25
    $region24: #{discriminator_forward.1} parent=1 // pred_region
      _
    $region25: #{discriminator_forward.1} parent=1 // pred_fallthru
      _
    // Predicated region
    $region26: #{discriminator_forward.1} parent=1 // pred_check
      _
    $region27: #{discriminator_forward.1} parent=1 // pred_check_branch
      %36 = sbr.rel (0) target = $region29
    $region28: #{discriminator_forward.1} parent=1 // pred_region
      _
    $region29: #{discriminator_forward.1} parent=1 // pred_fallthru
      _
    // Predicated region
    $region30: #{discriminator_forward.1} parent=1 // pred_check
      _
    $region31: #{discriminator_forward.1} parent=1 // pred_check_branch
      %38 = sbr.rel (0) target = $region33
    $region32: #{discriminator_forward.1} parent=1 // pred_region
      %39 = dma.done [#allocation3], 25088
    $region33: #{discriminator_forward.1} parent=1 // pred_fallthru
      _
    %v41 = vld [vmem:[%s0] sm:$0xff]
    %v42 = vld [vmem:[%s0 + $0x8] sm:$0xff]
    %v43 = vld [vmem:[%s0 + $0x10] sm:$0xff]
    %v44 = vld [vmem:[%s0 + $0x18] sm:$0xff]
    %v45 = vld [vmem:[%s0 + $0x20] sm:$0xff]
    %v46 = vld [vmem:[%s0 + $0x28] sm:$0xff]
    %v47 = vld [vmem:[%s0 + $0x30] sm:$0xff]
    %v48 = vpack.c.bf16 %v41, %v41
    %v49 = vpack.c.bf16 %v42, %v42
    %v50 = vpack.c.bf16 %v43, %v43
    %v51 = vpack.c.bf16 %v44, %v44
    %v52 = vpack.c.bf16 %v45, %v45
    %v53 = vpack.c.bf16 %v46, %v46
    %v54 = vpack.c.bf16 %v47, %v47
    %v55 = vld [vmem:[#allocation2] sm:$0xff]
    %v56 = vld [vmem:[#allocation2 + $0x8] sm:$0xff]
    %v57 = vld [vmem:[#allocation2 + $0x10] sm:$0xff]
    %v58 = vld [vmem:[#allocation2 + $0x18] sm:$0xff]
    %v59 = vld [vmem:[#allocation2 + $0x20] sm:$0xff]
    %v60 = vld [vmem:[#allocation2 + $0x28] sm:$0xff]
    %v61 = vld [vmem:[#allocation2 + $0x30] sm:$0xff]
    %v62 = vld [vmem:[#allocation2 + $0x38] sm:$0xff]
    %v63 = vld [vmem:[#allocation2 + $0x40] sm:$0xff]
    %v64 = vld [vmem:[#allocation2 + $0x48] sm:$0xff]
    %v65 = vld [vmem:[#allocation2 + $0x50] sm:$0xff]
    %v66 = vld [vmem:[#allocation2 + $0x58] sm:$0xff]
    %v67 = vld [vmem:[#allocation2 + $0x60] sm:$0xff]
    %v68 = vld [vmem:[#allocation2 + $0x68] sm:$0xff]
    %v69 = vld [vmem:[#allocation2 + $0x70] sm:$0xff]
    %v70 = vld [vmem:[#allocation2 + $0x78] sm:$0xff]
    %v71 = vld [vmem:[#allocation2 + $0x80] sm:$0xff]
    %v72 = vld [vmem:[#allocation2 + $0x88] sm:$0xff]
    %v73 = vld [vmem:[#allocation2 + $0x90] sm:$0xff]
    %v74 = vld [vmem:[#allocation2 + $0x98] sm:$0xff]
    %v75 = vld [vmem:[#allocation2 + $0xa0] sm:$0xff]
    %v76 = vld [vmem:[#allocation2 + $0xa8] sm:$0xff]
    %v77 = vld [vmem:[#allocation2 + $0xb0] sm:$0xff]
    %v78 = vld [vmem:[#allocation2 + $0xb8] sm:$0xff]
    %v79 = vld [vmem:[#allocation2 + $0xc0] sm:$0xff]
    %v80 = vld [vmem:[#allocation2 + $0xc8] sm:$0xff]
    %v81 = vld [vmem:[#allocation2 + $0xd0] sm:$0xff]
    %v82 = vld [vmem:[#allocation2 + $0xd8] sm:$0xff]
    %v83 = vld [vmem:[#allocation2 + $0xe0] sm:$0xff]
    %v84 = vld [vmem:[#allocation2 + $0xe8] sm:$0xff]
    %v85 = vld [vmem:[#allocation2 + $0xf0] sm:$0xff]
    %v86 = vld [vmem:[#allocation2 + $0xf8] sm:$0xff]
    %v87 = vld [vmem:[#allocation2 + $0x100] sm:$0xff]
    %v88 = vld [vmem:[#allocation2 + $0x108] sm:$0xff]
    %v89 = vld [vmem:[#allocation2 + $0x110] sm:$0xff]
    %v90 = vld [vmem:[#allocation2 + $0x118] sm:$0xff]
    %v91 = vld [vmem:[#allocation2 + $0x120] sm:$0xff]
    %v92 = vld [vmem:[#allocation2 + $0x128] sm:$0xff]
    %v93 = vld [vmem:[#allocation2 + $0x130] sm:$0xff]
    %v94 = vld [vmem:[#allocation2 + $0x138] sm:$0xff]
    %v95 = vld [vmem:[#allocation2 + $0x140] sm:$0xff]
    %v96 = vld [vmem:[#allocation2 + $0x148] sm:$0xff]
    %v97 = vld [vmem:[#allocation2 + $0x150] sm:$0xff]
    %v98 = vld [vmem:[#allocation2 + $0x158] sm:$0xff]
    %v99 = vld [vmem:[#allocation2 + $0x160] sm:$0xff]
    %v100 = vld [vmem:[#allocation2 + $0x168] sm:$0xff]
    %v101 = vld [vmem:[#allocation2 + $0x170] sm:$0xff]
    %v102 = vld [vmem:[#allocation2 + $0x178] sm:$0xff]
    %v103 = vld [vmem:[#allocation2 + $0x180] sm:$0xff]
    %v104 = vld [vmem:[#allocation2 + $0x188] sm:$0xff]
    %v105 = vld [vmem:[#allocation2 + $0x190] sm:$0xff]
    %v106 = vld [vmem:[#allocation2 + $0x198] sm:$0xff]
    %v107 = vld [vmem:[#allocation2 + $0x1a0] sm:$0xff]
    %v108 = vld [vmem:[#allocation2 + $0x1a8] sm:$0xff]
    %v109 = vld [vmem:[#allocation2 + $0x1b0] sm:$0xff]
    %v110 = vld [vmem:[#allocation2 + $0x1b8] sm:$0xff]
    %v111 = vld [vmem:[#allocation2 + $0x1c0] sm:$0xff]
    %v112 = vld [vmem:[#allocation2 + $0x1c8] sm:$0xff]
    %v113 = vld [vmem:[#allocation2 + $0x1d0] sm:$0xff]
    %v114 = vld [vmem:[#allocation2 + $0x1d8] sm:$0xff]
    %v115 = vld [vmem:[#allocation2 + $0x1e0] sm:$0xff]
    %v116 = vld [vmem:[#allocation2 + $0x1e8] sm:$0xff]
    %v117 = vld [vmem:[#allocation2 + $0x1f0] sm:$0xff]
    %v118 = vld [vmem:[#allocation2 + $0x1f8] sm:$0xff]
    %v119 = vld [vmem:[#allocation2 + $0x200] sm:$0xff]
    %v120 = vld [vmem:[#allocation2 + $0x208] sm:$0xff]
    %v121 = vld [vmem:[#allocation2 + $0x210] sm:$0xff]
    %v122 = vld [vmem:[#allocation2 + $0x218] sm:$0xff]
    %v123 = vld [vmem:[#allocation2 + $0x220] sm:$0xff]
    %v124 = vld [vmem:[#allocation2 + $0x228] sm:$0xff]
    %v125 = vld [vmem:[#allocation2 + $0x230] sm:$0xff]
    %v126 = vld [vmem:[#allocation2 + $0x238] sm:$0xff]
    %v127 = vld [vmem:[#allocation2 + $0x240] sm:$0xff]
    %v128 = vld [vmem:[#allocation2 + $0x248] sm:$0xff]
    %v129 = vld [vmem:[#allocation2 + $0x250] sm:$0xff]
    %v130 = vld [vmem:[#allocation2 + $0x258] sm:$0xff]
    %v131 = vld [vmem:[#allocation2 + $0x260] sm:$0xff]
    %v132 = vld [vmem:[#allocation2 + $0x268] sm:$0xff]
    %v133 = vld [vmem:[#allocation2 + $0x270] sm:$0xff]
    %v134 = vld [vmem:[#allocation2 + $0x278] sm:$0xff]
    %v135 = vld [vmem:[#allocation2 + $0x280] sm:$0xff]
    %v136 = vld [vmem:[#allocation2 + $0x288] sm:$0xff]
    %v137 = vld [vmem:[#allocation2 + $0x290] sm:$0xff]
    %v138 = vld [vmem:[#allocation2 + $0x298] sm:$0xff]
    %v139 = vld [vmem:[#allocation2 + $0x2a0] sm:$0xff]
    %v140 = vld [vmem:[#allocation2 + $0x2a8] sm:$0xff]
    %v141 = vld [vmem:[#allocation2 + $0x2b0] sm:$0xff]
    %v142 = vld [vmem:[#allocation2 + $0x2b8] sm:$0xff]
    %v143 = vld [vmem:[#allocation2 + $0x2c0] sm:$0xff]
    %v144 = vld [vmem:[#allocation2 + $0x2c8] sm:$0xff]
    %v145 = vld [vmem:[#allocation2 + $0x2d0] sm:$0xff]
    %v146 = vld [vmem:[#allocation2 + $0x2d8] sm:$0xff]
    %v147 = vld [vmem:[#allocation2 + $0x2e0] sm:$0xff]
    %v148 = vld [vmem:[#allocation2 + $0x2e8] sm:$0xff]
    %v149 = vld [vmem:[#allocation2 + $0x2f0] sm:$0xff]
    %v150 = vld [vmem:[#allocation2 + $0x2f8] sm:$0xff]
    %v151 = vld [vmem:[#allocation2 + $0x300] sm:$0xff]
    %v152 = vld [vmem:[#allocation2 + $0x308] sm:$0xff]
    %v153 = vld [vmem:[#allocation2 + $0x310] sm:$0xff]
    %v154 = vld [vmem:[#allocation2 + $0x318] sm:$0xff]
    %v155 = vld [vmem:[#allocation2 + $0x320] sm:$0xff]
    %v156 = vld [vmem:[#allocation2 + $0x328] sm:$0xff]
    %v157 = vld [vmem:[#allocation2 + $0x330] sm:$0xff]
    %v158 = vld [vmem:[#allocation2 + $0x338] sm:$0xff]
    %v159 = vld [vmem:[#allocation2 + $0x340] sm:$0xff]
    %v160 = vld [vmem:[#allocation2 + $0x348] sm:$0xff]
    %v161 = vld [vmem:[#allocation2 + $0x350] sm:$0xff]
    %v162 = vld [vmem:[#allocation2 + $0x358] sm:$0xff]
    %v163 = vld [vmem:[#allocation2 + $0x360] sm:$0xff]
    %v164 = vld [vmem:[#allocation2 + $0x368] sm:$0xff]
    %v165 = vld [vmem:[#allocation2 + $0x370] sm:$0xff]
    %v166 = vld [vmem:[#allocation2 + $0x378] sm:$0xff]
    %v167 = vld [vmem:[#allocation2 + $0x380] sm:$0xff]
    %v168 = vld [vmem:[#allocation2 + $0x388] sm:$0xff]
    %v169 = vld [vmem:[#allocation2 + $0x390] sm:$0xff]
    %v170 = vld [vmem:[#allocation2 + $0x398] sm:$0xff]
    %v171 = vld [vmem:[#allocation2 + $0x3a0] sm:$0xff]
    %v172 = vld [vmem:[#allocation2 + $0x3a8] sm:$0xff]
    %v173 = vld [vmem:[#allocation2 + $0x3b0] sm:$0xff]
    %v174 = vld [vmem:[#allocation2 + $0x3b8] sm:$0xff]
    %v175 = vld [vmem:[#allocation2 + $0x3c0] sm:$0xff]
    %v176 = vld [vmem:[#allocation2 + $0x3c8] sm:$0xff]
    %v177 = vld [vmem:[#allocation2 + $0x3d0] sm:$0xff]
    %v178 = vld [vmem:[#allocation2 + $0x3d8] sm:$0xff]
    %v179 = vld [vmem:[#allocation2 + $0x3e0] sm:$0xff]
    %v180 = vld [vmem:[#allocation2 + $0x3e8] sm:$0xff]
    %v181 = vld [vmem:[#allocation2 + $0x3f0] sm:$0xff]
    %v182 = vld [vmem:[#allocation2 + $0x3f8] sm:$0xff]
    %v183 = vld [vmem:[#allocation2 + $0x400] sm:$0xff]
    %v184 = vld [vmem:[#allocation2 + $0x408] sm:$0xff]
    %v185 = vld [vmem:[#allocation2 + $0x410] sm:$0xff]
    %v186 = vld [vmem:[#allocation2 + $0x418] sm:$0xff]
    %v187 = vld [vmem:[#allocation2 + $0x420] sm:$0xff]
    %v188 = vld [vmem:[#allocation2 + $0x428] sm:$0xff]
    %v189 = vld [vmem:[#allocation2 + $0x430] sm:$0xff]
    %v190 = vld [vmem:[#allocation2 + $0x438] sm:$0xff]
    %v191 = vld [vmem:[#allocation2 + $0x440] sm:$0xff]
    %v192 = vld [vmem:[#allocation2 + $0x448] sm:$0xff]
    %v193 = vld [vmem:[#allocation2 + $0x450] sm:$0xff]
    %v194 = vld [vmem:[#allocation2 + $0x458] sm:$0xff]
    %v195 = vld [vmem:[#allocation2 + $0x460] sm:$0xff]
    %v196 = vld [vmem:[#allocation2 + $0x468] sm:$0xff]
    %v197 = vld [vmem:[#allocation2 + $0x470] sm:$0xff]
    %v198 = vld [vmem:[#allocation2 + $0x478] sm:$0xff]
    %v199 = vld [vmem:[#allocation2 + $0x480] sm:$0xff]
    %v200 = vld [vmem:[#allocation2 + $0x488] sm:$0xff]
    %v201 = vld [vmem:[#allocation2 + $0x490] sm:$0xff]
    %v202 = vld [vmem:[#allocation2 + $0x498] sm:$0xff]
    %v203 = vld [vmem:[#allocation2 + $0x4a0] sm:$0xff]
    %v204 = vld [vmem:[#allocation2 + $0x4a8] sm:$0xff]
    %v205 = vld [vmem:[#allocation2 + $0x4b0] sm:$0xff]
    %v206 = vld [vmem:[#allocation2 + $0x4b8] sm:$0xff]
    %v207 = vld [vmem:[#allocation2 + $0x4c0] sm:$0xff]
    %v208 = vld [vmem:[#allocation2 + $0x4c8] sm:$0xff]
    %v209 = vld [vmem:[#allocation2 + $0x4d0] sm:$0xff]
    %v210 = vld [vmem:[#allocation2 + $0x4d8] sm:$0xff]
    %v211 = vld [vmem:[#allocation2 + $0x4e0] sm:$0xff]
    %v212 = vld [vmem:[#allocation2 + $0x4e8] sm:$0xff]
    %v213 = vld [vmem:[#allocation2 + $0x4f0] sm:$0xff]
    %v214 = vld [vmem:[#allocation2 + $0x4f8] sm:$0xff]
    %v215 = vld [vmem:[#allocation2 + $0x500] sm:$0xff]
    %v216 = vld [vmem:[#allocation2 + $0x508] sm:$0xff]
    %v217 = vld [vmem:[#allocation2 + $0x510] sm:$0xff]
    %v218 = vld [vmem:[#allocation2 + $0x518] sm:$0xff]
    %v219 = vld [vmem:[#allocation2 + $0x520] sm:$0xff]
    %v220 = vld [vmem:[#allocation2 + $0x528] sm:$0xff]
    %v221 = vld [vmem:[#allocation2 + $0x530] sm:$0xff]
    %v222 = vld [vmem:[#allocation2 + $0x538] sm:$0xff]
    %v223 = vld [vmem:[#allocation2 + $0x540] sm:$0xff]
    %v224 = vld [vmem:[#allocation2 + $0x548] sm:$0xff]
    %v225 = vld [vmem:[#allocation2 + $0x550] sm:$0xff]
    %v226 = vld [vmem:[#allocation2 + $0x558] sm:$0xff]
    %v227 = vld [vmem:[#allocation2 + $0x560] sm:$0xff]
    %v228 = vld [vmem:[#allocation2 + $0x568] sm:$0xff]
    %v229 = vld [vmem:[#allocation2 + $0x570] sm:$0xff]
    %v230 = vld [vmem:[#allocation2 + $0x578] sm:$0xff]
    %v231 = vld [vmem:[#allocation2 + $0x580] sm:$0xff]
    %v232 = vld [vmem:[#allocation2 + $0x588] sm:$0xff]
    %v233 = vld [vmem:[#allocation2 + $0x590] sm:$0xff]
    %v234 = vld [vmem:[#allocation2 + $0x598] sm:$0xff]
    %v235 = vld [vmem:[#allocation2 + $0x5a0] sm:$0xff]
    %v236 = vld [vmem:[#allocation2 + $0x5a8] sm:$0xff]
    %v237 = vld [vmem:[#allocation2 + $0x5b0] sm:$0xff]
    %v238 = vld [vmem:[#allocation2 + $0x5b8] sm:$0xff]
    %v239 = vld [vmem:[#allocation2 + $0x5c0] sm:$0xff]
    %v240 = vld [vmem:[#allocation2 + $0x5c8] sm:$0xff]
    %v241 = vld [vmem:[#allocation2 + $0x5d0] sm:$0xff]
    %v242 = vld [vmem:[#allocation2 + $0x5d8] sm:$0xff]
    %v243 = vld [vmem:[#allocation2 + $0x5e0] sm:$0xff]
    %v244 = vld [vmem:[#allocation2 + $0x5e8] sm:$0xff]
    %v245 = vld [vmem:[#allocation2 + $0x5f0] sm:$0xff]
    %v246 = vld [vmem:[#allocation2 + $0x5f8] sm:$0xff]
    %v247 = vld [vmem:[#allocation2 + $0x600] sm:$0xff]
    %v248 = vld [vmem:[#allocation2 + $0x608] sm:$0xff]
    %v249 = vld [vmem:[#allocation2 + $0x610] sm:$0xff]
    %v250 = vld [vmem:[#allocation2 + $0x618] sm:$0xff]
    %v251 = vpack.c.bf16 %v57, %v55
    %v252 = vpack.c.bf16 %v58, %v56
    %v253 = vpack.c.bf16 %v61, %v59
    %v254 = vpack.c.bf16 %v62, %v60
    %v255 = vpack.c.bf16 %v65, %v63
    %v256 = vpack.c.bf16 %v66, %v64
    %v257 = vpack.c.bf16 %v69, %v67
    %v258 = vpack.c.bf16 %v70, %v68
    %v259 = vpack.c.bf16 %v73, %v71
    %v260 = vpack.c.bf16 %v74, %v72
    %v261 = vpack.c.bf16 %v77, %v75
    %v262 = vpack.c.bf16 %v78, %v76
    %v263 = vpack.c.bf16 %v81, %v79
    %v264 = vpack.c.bf16 %v82, %v80
    %v265 = vpack.c.bf16 %v85, %v83
    %v266 = vpack.c.bf16 %v86, %v84
    %v267 = vpack.c.bf16 %v89, %v87
    %v268 = vpack.c.bf16 %v90, %v88
    %v269 = vpack.c.bf16 %v93, %v91
    %v270 = vpack.c.bf16 %v94, %v92
    %v271 = vpack.c.bf16 %v97, %v95
    %v272 = vpack.c.bf16 %v98, %v96
    %v273 = vpack.c.bf16 %v101, %v99
    %v274 = vpack.c.bf16 %v102, %v100
    %v275 = vpack.c.bf16 %v105, %v103
    %v276 = vpack.c.bf16 %v106, %v104
    %v277 = vpack.c.bf16 %v109, %v107
    %v278 = vpack.c.bf16 %v110, %v108
    %v279 = vpack.c.bf16 %v113, %v111
    %v280 = vpack.c.bf16 %v114, %v112
    %v281 = vpack.c.bf16 %v117, %v115
    %v282 = vpack.c.bf16 %v118, %v116
    %v283 = vpack.c.bf16 %v121, %v119
    %v284 = vpack.c.bf16 %v122, %v120
    %v285 = vpack.c.bf16 %v125, %v123
    %v286 = vpack.c.bf16 %v126, %v124
    %v287 = vpack.c.bf16 %v129, %v127
    %v288 = vpack.c.bf16 %v130, %v128
    %v289 = vpack.c.bf16 %v133, %v131
    %v290 = vpack.c.bf16 %v134, %v132
    %v291 = vpack.c.bf16 %v137, %v135
    %v292 = vpack.c.bf16 %v138, %v136
    %v293 = vpack.c.bf16 %v141, %v139
    %v294 = vpack.c.bf16 %v142, %v140
    %v295 = vpack.c.bf16 %v145, %v143
    %v296 = vpack.c.bf16 %v146, %v144
    %v297 = vpack.c.bf16 %v149, %v147
    %v298 = vpack.c.bf16 %v150, %v148
    %v299 = vpack.c.bf16 %v153, %v151
    %v300 = vpack.c.bf16 %v154, %v152
    %v301 = vpack.c.bf16 %v157, %v155
    %v302 = vpack.c.bf16 %v158, %v156
    %v303 = vpack.c.bf16 %v161, %v159
    %v304 = vpack.c.bf16 %v162, %v160
    %v305 = vpack.c.bf16 %v165, %v163
    %v306 = vpack.c.bf16 %v166, %v164
    %v307 = vpack.c.bf16 %v169, %v167
    %v308 = vpack.c.bf16 %v170, %v168
    %v309 = vpack.c.bf16 %v173, %v171
    %v310 = vpack.c.bf16 %v174, %v172
    %v311 = vpack.c.bf16 %v177, %v175
    %v312 = vpack.c.bf16 %v178, %v176
    %v313 = vpack.c.bf16 %v181, %v179
    %v314 = vpack.c.bf16 %v182, %v180
    %v315 = vpack.c.bf16 %v185, %v183
    %v316 = vpack.c.bf16 %v186, %v184
    %v317 = vpack.c.bf16 %v189, %v187
    %v318 = vpack.c.bf16 %v190, %v188
    %v319 = vpack.c.bf16 %v193, %v191
    %v320 = vpack.c.bf16 %v194, %v192
    %v321 = vpack.c.bf16 %v197, %v195
    %v322 = vpack.c.bf16 %v198, %v196
    %v323 = vpack.c.bf16 %v201, %v199
    %v324 = vpack.c.bf16 %v202, %v200
    %v325 = vpack.c.bf16 %v205, %v203
    %v326 = vpack.c.bf16 %v206, %v204
    %v327 = vpack.c.bf16 %v209, %v207
    %v328 = vpack.c.bf16 %v210, %v208
    %v329 = vpack.c.bf16 %v213, %v211
    %v330 = vpack.c.bf16 %v214, %v212
    %v331 = vpack.c.bf16 %v217, %v215
    %v332 = vpack.c.bf16 %v218, %v216
    %v333 = vpack.c.bf16 %v221, %v219
    %v334 = vpack.c.bf16 %v222, %v220
    %v335 = vpack.c.bf16 %v225, %v223
    %v336 = vpack.c.bf16 %v226, %v224
    %v337 = vpack.c.bf16 %v229, %v227
    %v338 = vpack.c.bf16 %v230, %v228
    %v339 = vpack.c.bf16 %v233, %v231
    %v340 = vpack.c.bf16 %v234, %v232
    %v341 = vpack.c.bf16 %v237, %v235
    %v342 = vpack.c.bf16 %v238, %v236
    %v343 = vpack.c.bf16 %v241, %v239
    %v344 = vpack.c.bf16 %v242, %v240
    %v345 = vpack.c.bf16 %v245, %v243
    %v346 = vpack.c.bf16 %v246, %v244
    %v347 = vpack.c.bf16 %v249, %v247
    %v348 = vpack.c.bf16 %v250, %v248
    %v349 = vld [vmem:[%s2] sm:$0x3]
    %v351 = vlaneseq
    %v352 = vshrl.u32 %v351, 7
    %v353 = vsub.s32 0, %v352
    %v354 = vrot.slane %v349, %v353
    %v355 = vlaneseq
    %v356 = vshrl.u32 %v355, 7
    %v357 = vsub.s32 1, %v356
    %v358 = vrot.slane %v349, %v357
    %vm361 = vcmask 130048
    %v363 = vsel %vm361, %v54, 0
    %365 = vmatprep.subr.bf16.mxu0 %v266
    %366 = vmatpush1.bf16.msra.mxu0 %v265
    %367 = vmatprep.subr.bf16.mxu0 %v264
    %368 = vmatpush1.bf16.msra.mxu0 %v263
    %369 = vmatprep.subr.bf16.mxu0 %v262
    %370 = vmatpush1.bf16.msra.mxu0 %v261
    %371 = vmatprep.subr.bf16.mxu0 %v260
    %372 = vmatpush1.bf16.msra.mxu0 %v259
    %373 = vmatprep.subr.bf16.mxu0 %v258
    %374 = vmatpush1.bf16.msra.mxu0 %v257
    %375 = vmatprep.subr.bf16.mxu0 %v256
    %376 = vmatpush1.bf16.msra.mxu0 %v255
    %377 = vmatprep.subr.bf16.mxu0 %v254
    %378 = vmatpush1.bf16.msra.mxu0 %v253
    %379 = vmatprep.subr.bf16.mxu0 %v252
    %380 = vmatpush1.bf16.msra.mxu0 %v251
    %381 = vmatprep.subr.bf16.mxu0 %v282
    %382 = vmatpush2.bf16.msra.mxu0 %v281
    %383 = vmatprep.subr.bf16.mxu0 %v280
    %384 = vmatpush2.bf16.msra.mxu0 %v279
    %385 = vmatprep.subr.bf16.mxu0 %v278
    %386 = vmatpush2.bf16.msra.mxu0 %v277
    %387 = vmatprep.subr.bf16.mxu0 %v276
    %388 = vmatpush2.bf16.msra.mxu0 %v275
    %389 = vmatprep.subr.bf16.mxu0 %v274
    %390 = vmatpush2.bf16.msra.mxu0 %v273
    %391 = vmatprep.subr.bf16.mxu0 %v272
    %392 = vmatpush2.bf16.msra.mxu0 %v271
    %393 = vmatprep.subr.bf16.mxu0 %v270
    %394 = vmatpush2.bf16.msra.mxu0 %v269
    %395 = vmatprep.subr.bf16.mxu0 %v268
    %396 = vmatpush2.bf16.msra.mxu0 %v267
    %397 = vmatprep.mubr.bf16.mxu0 %v49
    %398 = vmatmul.mubr.bf16.gmra.mxu0 %v48
    %v399 = vpop.f32.mrf.mxu0
    %v400 = vadd.f32 %v354, %v399
    %v401 = vpop.f32.mrf.mxu0
    %v402 = vadd.f32 %v358, %v401
    %v403 = vpop.f32.mrf.mxu0
    %v404 = vpop.f32.mrf.mxu0
    %405 = vdwg.mxu0
    %406 = vmatprep.subr.bf16.mxu0 %v298
    %407 = vmatpush1.bf16.msra.mxu0 %v297
    %408 = vmatprep.subr.bf16.mxu0 %v296
    %409 = vmatpush1.bf16.msra.mxu0 %v295
    %410 = vmatprep.subr.bf16.mxu0 %v294
    %411 = vmatpush1.bf16.msra.mxu0 %v293
    %412 = vmatprep.subr.bf16.mxu0 %v292
    %413 = vmatpush1.bf16.msra.mxu0 %v291
    %414 = vmatprep.subr.bf16.mxu0 %v290
    %415 = vmatpush1.bf16.msra.mxu0 %v289
    %416 = vmatprep.subr.bf16.mxu0 %v288
    %417 = vmatpush1.bf16.msra.mxu0 %v287
    %418 = vmatprep.subr.bf16.mxu0 %v286
    %419 = vmatpush1.bf16.msra.mxu0 %v285
    %420 = vmatprep.subr.bf16.mxu0 %v284
    %421 = vmatpush1.bf16.msra.mxu0 %v283
    %422 = vmatprep.subr.bf16.mxu0 %v314
    %423 = vmatpush2.bf16.msra.mxu0 %v313
    %424 = vmatprep.subr.bf16.mxu0 %v312
    %425 = vmatpush2.bf16.msra.mxu0 %v311
    %426 = vmatprep.subr.bf16.mxu0 %v310
    %427 = vmatpush2.bf16.msra.mxu0 %v309
    %428 = vmatprep.subr.bf16.mxu0 %v308
    %429 = vmatpush2.bf16.msra.mxu0 %v307
    %430 = vmatprep.subr.bf16.mxu0 %v306
    %431 = vmatpush2.bf16.msra.mxu0 %v305
    %432 = vmatprep.subr.bf16.mxu0 %v304
    %433 = vmatpush2.bf16.msra.mxu0 %v303
    %434 = vmatprep.subr.bf16.mxu0 %v302
    %435 = vmatpush2.bf16.msra.mxu0 %v301
    %436 = vmatprep.subr.bf16.mxu0 %v300
    %437 = vmatpush2.bf16.msra.mxu0 %v299
    %438 = vmatprep.mubr.bf16.mxu0 %v51
    %439 = vmatmul.mubr.bf16.gmra.mxu0 %v50
    %v440 = vpop.f32.mrf.mxu0
    %v441 = vadd.f32 %v400, %v440
    %v442 = vpop.f32.mrf.mxu0
    %v443 = vadd.f32 %v402, %v442
    %v444 = vpop.f32.mrf.mxu0
    %v445 = vpop.f32.mrf.mxu0
    %446 = vdwg.mxu0
    %447 = vmatprep.subr.bf16.mxu0 %v330
    %448 = vmatpush1.bf16.msra.mxu0 %v329
    %449 = vmatprep.subr.bf16.mxu0 %v328
    %450 = vmatpush1.bf16.msra.mxu0 %v327
    %451 = vmatprep.subr.bf16.mxu0 %v326
    %452 = vmatpush1.bf16.msra.mxu0 %v325
    %453 = vmatprep.subr.bf16.mxu0 %v324
    %454 = vmatpush1.bf16.msra.mxu0 %v323
    %455 = vmatprep.subr.bf16.mxu0 %v322
    %456 = vmatpush1.bf16.msra.mxu0 %v321
    %457 = vmatprep.subr.bf16.mxu0 %v320
    %458 = vmatpush1.bf16.msra.mxu0 %v319
    %459 = vmatprep.subr.bf16.mxu0 %v318
    %460 = vmatpush1.bf16.msra.mxu0 %v317
    %461 = vmatprep.subr.bf16.mxu0 %v316
    %462 = vmatpush1.bf16.msra.mxu0 %v315
    %463 = vmatprep.subr.bf16.mxu0 %v346
    %464 = vmatpush2.bf16.msra.mxu0 %v345
    %465 = vmatprep.subr.bf16.mxu0 %v344
    %466 = vmatpush2.bf16.msra.mxu0 %v343
    %467 = vmatprep.subr.bf16.mxu0 %v342
    %468 = vmatpush2.bf16.msra.mxu0 %v341
    %469 = vmatprep.subr.bf16.mxu0 %v340
    %470 = vmatpush2.bf16.msra.mxu0 %v339
    %471 = vmatprep.subr.bf16.mxu0 %v338
    %472 = vmatpush2.bf16.msra.mxu0 %v337
    %473 = vmatprep.subr.bf16.mxu0 %v336
    %474 = vmatpush2.bf16.msra.mxu0 %v335
    %475 = vmatprep.subr.bf16.mxu0 %v334
    %476 = vmatpush2.bf16.msra.mxu0 %v333
    %477 = vmatprep.subr.bf16.mxu0 %v332
    %478 = vmatpush2.bf16.msra.mxu0 %v331
    %479 = vmatprep.mubr.bf16.mxu0 %v53
    %480 = vmatmul.mubr.bf16.gmra.mxu0 %v52
    %v481 = vpop.f32.mrf.mxu0
    %v482 = vadd.f32 %v441, %v481
    %v483 = vpop.f32.mrf.mxu0
    %v484 = vadd.f32 %v443, %v483
    %v485 = vpop.f32.mrf.mxu0
    %v486 = vpop.f32.mrf.mxu0
    %487 = vdwg.mxu0
    %488 = vmatprep.subr.bf16.mxu0 0
    %489 = vmatpush1.bf16.msra.mxu0 0
    %490 = vmatprep.subr.bf16.mxu0 0
    %491 = vmatpush1.bf16.msra.mxu0 0
    %492 = vmatprep.subr.bf16.mxu0 0
    %493 = vmatpush1.bf16.msra.mxu0 0
    %494 = vmatprep.subr.bf16.mxu0 0
    %495 = vmatpush1.bf16.msra.mxu0 0
    %496 = vmatprep.subr.bf16.mxu0 0
    %497 = vmatpush1.bf16.msra.mxu0 0
    %498 = vmatprep.subr.bf16.mxu0 0
    %499 = vmatpush1.bf16.msra.mxu0 0
    %500 = vmatprep.subr.bf16.mxu0 0
    %501 = vmatpush1.bf16.msra.mxu0 0
    %502 = vmatprep.subr.bf16.mxu0 %v348
    %503 = vmatpush1.bf16.msra.mxu0 %v347
    %504 = vmatprep.subr.bf16.mxu0 0
    %505 = vmatpush2.bf16.msra.mxu0 0
    %506 = vmatprep.subr.bf16.mxu0 0
    %507 = vmatpush2.bf16.msra.mxu0 0
    %508 = vmatprep.subr.bf16.mxu0 0
    %509 = vmatpush2.bf16.msra.mxu0 0
    %510 = vmatprep.subr.bf16.mxu0 0
    %511 = vmatpush2.bf16.msra.mxu0 0
    %512 = vmatprep.subr.bf16.mxu0 0
    %513 = vmatpush2.bf16.msra.mxu0 0
    %514 = vmatprep.subr.bf16.mxu0 0
    %515 = vmatpush2.bf16.msra.mxu0 0
    %516 = vmatprep.subr.bf16.mxu0 0
    %517 = vmatpush2.bf16.msra.mxu0 0
    %518 = vmatprep.subr.bf16.mxu0 0
    %519 = vmatpush2.bf16.msra.mxu0 0
    %520 = vmatprep.mubr.bf16.mxu0 0
    %521 = vmatmul.mubr.bf16.gmra.mxu0 %v363
    %v522 = vpop.f32.mrf.mxu0
    %v523 = vadd.f32 %v482, %v522
    %v524 = vpop.f32.mrf.mxu0
    %v525 = vadd.f32 %v484, %v524
    %v526 = vpop.f32.mrf.mxu0
    %v527 = vpop.f32.mrf.mxu0
    %528 = vdwg.mxu0
    %vm529 = vcmp.ge.f32.partialorder %v523, 0.0
    %vm530 = vcmp.ge.f32.partialorder %v525, 0.0
    %v531 = vmul.f32 %v523, 0.2
    %v532 = vmul.f32 %v525, 0.2
    %v533 = vsel %vm529, %v523, %v531
    %v534 = vsel %vm530, %v525, %v532
    %v535 = vpack.c.bf16 %v533, %v533
    %v536 = vpack.c.bf16 %v534, %v534
    %v537 = vld [vmem:[%s3] sm:$0xff]
    %v538 = vld [vmem:[%s3 + $0x8] sm:$0xff]
    %v539 = vld [vmem:[%s3 + $0x10] sm:$0xff]
    %v540 = vld [vmem:[%s3 + $0x18] sm:$0xff]
    %v541 = vld [vmem:[%s3 + $0x20] sm:$0xff]
    %v542 = vld [vmem:[%s3 + $0x28] sm:$0xff]
    %v543 = vld [vmem:[%s3 + $0x30] sm:$0xff]
    %v544 = vld [vmem:[%s3 + $0x38] sm:$0xff]
    %v545 = vld [vmem:[%s3 + $0x40] sm:$0xff]
    %v546 = vld [vmem:[%s3 + $0x48] sm:$0xff]
    %v547 = vld [vmem:[%s3 + $0x50] sm:$0xff]
    %v548 = vld [vmem:[%s3 + $0x58] sm:$0xff]
    %v549 = vld [vmem:[%s3 + $0x60] sm:$0xff]
    %v550 = vld [vmem:[%s3 + $0x68] sm:$0xff]
    %v551 = vld [vmem:[%s3 + $0x70] sm:$0xff]
    %v552 = vld [vmem:[%s3 + $0x78] sm:$0xff]
    %v553 = vld [vmem:[%s3 + $0x80] sm:$0xff]
    %v554 = vld [vmem:[%s3 + $0x88] sm:$0xff]
    %v555 = vld [vmem:[%s3 + $0x90] sm:$0xff]
    %v556 = vld [vmem:[%s3 + $0x98] sm:$0xff]
    %v557 = vld [vmem:[%s3 + $0xa0] sm:$0xff]
    %v558 = vld [vmem:[%s3 + $0xa8] sm:$0xff]
    %v559 = vld [vmem:[%s3 + $0xb0] sm:$0xff]
    %v560 = vld [vmem:[%s3 + $0xb8] sm:$0xff]
    %v561 = vld [vmem:[%s3 + $0xc0] sm:$0xff]
    %v562 = vld [vmem:[%s3 + $0xc8] sm:$0xff]
    %v563 = vld [vmem:[%s3 + $0xd0] sm:$0xff]
    %v564 = vld [vmem:[%s3 + $0xd8] sm:$0xff]
    %v565 = vld [vmem:[%s3 + $0xe0] sm:$0xff]
    %v566 = vld [vmem:[%s3 + $0xe8] sm:$0xff]
    %v567 = vld [vmem:[%s3 + $0xf0] sm:$0xff]
    %v568 = vld [vmem:[%s3 + $0xf8] sm:$0xff]
    %v569 = vpack.c.bf16 %v538, %v537
    %v570 = vpack.c.bf16 %v540, %v539
    %v571 = vpack.c.bf16 %v542, %v541
    %v572 = vpack.c.bf16 %v544, %v543
    %v573 = vpack.c.bf16 %v546, %v545
    %v574 = vpack.c.bf16 %v548, %v547
    %v575 = vpack.c.bf16 %v550, %v549
    %v576 = vpack.c.bf16 %v552, %v551
    %v577 = vpack.c.bf16 %v554, %v553
    %v578 = vpack.c.bf16 %v556, %v555
    %v579 = vpack.c.bf16 %v558, %v557
    %v580 = vpack.c.bf16 %v560, %v559
    %v581 = vpack.c.bf16 %v562, %v561
    %v582 = vpack.c.bf16 %v564, %v563
    %v583 = vpack.c.bf16 %v566, %v565
    %v584 = vpack.c.bf16 %v568, %v567
    %v585 = vld [vmem:[%s4] sm:$0x1]
    %v587 = vlaneseq
    %v588 = vshrl.u32 %v587, 7
    %v589 = vsub.s32 0, %v588
    %v590 = vrot.slane %v585, %v589
    %592 = vmatprep.subr.bf16.mxu0 0
    %593 = vmatpush1.bf16.msra.mxu0 %v576
    %594 = vmatprep.subr.bf16.mxu0 0
    %595 = vmatpush1.bf16.msra.mxu0 %v575
    %596 = vmatprep.subr.bf16.mxu0 0
    %597 = vmatpush1.bf16.msra.mxu0 %v574
    %598 = vmatprep.subr.bf16.mxu0 0
    %599 = vmatpush1.bf16.msra.mxu0 %v573
    %600 = vmatprep.subr.bf16.mxu0 0
    %601 = vmatpush1.bf16.msra.mxu0 %v572
    %602 = vmatprep.subr.bf16.mxu0 0
    %603 = vmatpush1.bf16.msra.mxu0 %v571
    %604 = vmatprep.subr.bf16.mxu0 0
    %605 = vmatpush1.bf16.msra.mxu0 %v570
    %606 = vmatprep.subr.bf16.mxu0 0
    %607 = vmatpush1.bf16.msra.mxu0 %v569
    %608 = vmatprep.subr.bf16.mxu0 0
    %609 = vmatpush2.bf16.msra.mxu0 %v584
    %610 = vmatprep.subr.bf16.mxu0 0
    %611 = vmatpush2.bf16.msra.mxu0 %v583
    %612 = vmatprep.subr.bf16.mxu0 0
    %613 = vmatpush2.bf16.msra.mxu0 %v582
    %614 = vmatprep.subr.bf16.mxu0 0
    %615 = vmatpush2.bf16.msra.mxu0 %v581
    %616 = vmatprep.subr.bf16.mxu0 0
    %617 = vmatpush2.bf16.msra.mxu0 %v580
    %618 = vmatprep.subr.bf16.mxu0 0
    %619 = vmatpush2.bf16.msra.mxu0 %v579
    %620 = vmatprep.subr.bf16.mxu0 0
    %621 = vmatpush2.bf16.msra.mxu0 %v578
    %622 = vmatprep.subr.bf16.mxu0 0
    %623 = vmatpush2.bf16.msra.mxu0 %v577
    %624 = vmatprep.mubr.bf16.mxu0 %v536
    %625 = vmatmul.mubr.bf16.gmra.mxu0 %v535
    %v626 = vpop.f32.mrf.mxu0
    %v627 = vadd.f32 %v590, %v626
    %v628 = vpop.f32.mrf.mxu0
    %v629 = vpop.f32.mrf.mxu0
    %v630 = vpop.f32.mrf.mxu0
    %631 = vdwg.mxu0
    %vm632 = vcmp.ge.f32.partialorder %v627, 0.0
    %v633 = vmul.f32 %v627, 0.2
    %v634 = vsel %vm632, %v627, %v633
    %v635 = vpack.c.bf16 %v634, %v634
    %v636 = vld [vmem:[%s5] sm:$0xff]
    %v637 = vld [vmem:[%s5 + $0x8] sm:$0xff]
    %v638 = vld [vmem:[%s5 + $0x10] sm:$0xff]
    %v639 = vld [vmem:[%s5 + $0x18] sm:$0xff]
    %v640 = vld [vmem:[%s5 + $0x20] sm:$0xff]
    %v641 = vld [vmem:[%s5 + $0x28] sm:$0xff]
    %v642 = vld [vmem:[%s5 + $0x30] sm:$0xff]
    %v643 = vld [vmem:[%s5 + $0x38] sm:$0xff]
    %v644 = vld [vmem:[%s5 + $0x40] sm:$0xff]
    %v645 = vld [vmem:[%s5 + $0x48] sm:$0xff]
    %v646 = vld [vmem:[%s5 + $0x50] sm:$0xff]
    %v647 = vld [vmem:[%s5 + $0x58] sm:$0xff]
    %v648 = vld [vmem:[%s5 + $0x60] sm:$0xff]
    %v649 = vld [vmem:[%s5 + $0x68] sm:$0xff]
    %v650 = vld [vmem:[%s5 + $0x70] sm:$0xff]
    %v651 = vld [vmem:[%s5 + $0x78] sm:$0xff]
    %v652 = vpack.c.bf16 %v637, %v636
    %v653 = vpack.c.bf16 %v639, %v638
    %v654 = vpack.c.bf16 %v641, %v640
    %v655 = vpack.c.bf16 %v643, %v642
    %v656 = vpack.c.bf16 %v645, %v644
    %v657 = vpack.c.bf16 %v647, %v646
    %v658 = vpack.c.bf16 %v649, %v648
    %v659 = vpack.c.bf16 %v651, %v650
    %v660 = vld [vmem:[%s6] sm:$0x1]
    %v662 = vlaneseq
    %v663 = vshrl.u32 %v662, 7
    %v664 = vsub.s32 0, %v663
    %v665 = vrot.slane %v660, %v664
    %667 = vmatprep.subr.bf16.mxu0 0
    %668 = vmatpush1.bf16.msra.mxu0 %v659
    %669 = vmatprep.subr.bf16.mxu0 0
    %670 = vmatpush1.bf16.msra.mxu0 %v658
    %671 = vmatprep.subr.bf16.mxu0 0
    %672 = vmatpush1.bf16.msra.mxu0 %v657
    %673 = vmatprep.subr.bf16.mxu0 0
    %674 = vmatpush1.bf16.msra.mxu0 %v656
    %675 = vmatprep.subr.bf16.mxu0 0
    %676 = vmatpush1.bf16.msra.mxu0 %v655
    %677 = vmatprep.subr.bf16.mxu0 0
    %678 = vmatpush1.bf16.msra.mxu0 %v654
    %679 = vmatprep.subr.bf16.mxu0 0
    %680 = vmatpush1.bf16.msra.mxu0 %v653
    %681 = vmatprep.subr.bf16.mxu0 0
    %682 = vmatpush1.bf16.msra.mxu0 %v652
    %683 = vmatprep.subr.bf16.mxu0 0
    %684 = vmatpush2.bf16.msra.mxu0 0
    %685 = vmatprep.subr.bf16.mxu0 0
    %686 = vmatpush2.bf16.msra.mxu0 0
    %687 = vmatprep.subr.bf16.mxu0 0
    %688 = vmatpush2.bf16.msra.mxu0 0
    %689 = vmatprep.subr.bf16.mxu0 0
    %690 = vmatpush2.bf16.msra.mxu0 0
    %691 = vmatprep.subr.bf16.mxu0 0
    %692 = vmatpush2.bf16.msra.mxu0 0
    %693 = vmatprep.subr.bf16.mxu0 0
    %694 = vmatpush2.bf16.msra.mxu0 0
    %695 = vmatprep.subr.bf16.mxu0 0
    %696 = vmatpush2.bf16.msra.mxu0 0
    %697 = vmatprep.subr.bf16.mxu0 0
    %698 = vmatpush2.bf16.msra.mxu0 0
    %699 = vmatprep.mubr.bf16.mxu0 0
    %700 = vmatmul.mubr.bf16.gmra.mxu0 %v635
    %v701 = vpop.f32.mrf.mxu0
    %v702 = vadd.f32 %v665, %v701
    %v703 = vpop.f32.mrf.mxu0
    %v704 = vpop.f32.mrf.mxu0
    %v705 = vpop.f32.mrf.mxu0
    %706 = vdwg.mxu0
    %v707 = vxor.u32 %v702, 2147483648
    %v708 = vmul.f32 %v707, 1.442695
    %v709 = vpow.pop %v708
    %v710 = vadd.f32 %v709, 1.0
    %v711 = vrcp.pop %v710
    %v712 = vmul.f32 1.0, %v711
    %713 = vst [vmem:[%s7] sm:$0xff] %v712
    // Predicated region
    $region34: #{discriminator_forward.1} parent=1 // pred_check
      _
    $region35: #{discriminator_forward.1} parent=1 // pred_check_branch
      %715 = sbr.rel (0) target = $region37
    $region36: #{discriminator_forward.1} parent=1 // pred_region
      _
    $region37: #{discriminator_forward.1} parent=1 // pred_fallthru
      _
    // Predicated region
    $region38: #{discriminator_forward.1} parent=1 // pred_check
      _
    $region39: #{discriminator_forward.1} parent=1 // pred_check_branch
      %717 = sbr.rel (0) target = $region41
    $region40: #{discriminator_forward.1} parent=1 // pred_region
      _
    $region41: #{discriminator_forward.1} parent=1 // pred_fallthru
      _
    %718 = vsyncpa [#allocation3], 1

</llo_original>
